<compile_context>
chip_gen: v7x
topology: tpu7x:2x2x1
jax: 0.10.0
libtpu: 0.0.40
codegen_flags: <defaults>
</compile_context>

<pallas_src>
import functools
import math

import jax
import jax.numpy as jnp
from jax.experimental import pallas as pl
from jax.experimental.pallas import tpu as pltpu


_ACTIVATIONS = {
    "relu": lambda v: jnp.maximum(v, 0.0),   # module default (all flags False)
    "softplus": jax.nn.softplus,
    "elu": jax.nn.elu,
    "tanh": jnp.tanh,
}


def _round_up(a, m):
    return ((a + m - 1) // m) * m


def _make_mlp_kernel(nonlinearity, num_layers):
    act = _ACTIVATIONS[nonlinearity]

    def kernel(xt_ref, *rest):
        """Fused feature-major MLP over one batch tile.

        xt_ref : [pd + input_dim, TB]   hstack((x, t)) transposed (streamed)
        rest   : (w0 [out0, pd+in], b0 [out0, 1],
                  w1 [out1, out0],  b1 [out1, 1], ...,
                  out_ref [out_last, TB])

        Every layer is W @ H on the MXU with the batch on the lane axis, bias
        is an [out, 1] lane broadcast, and the final store is lane-dense.
        """
        out_ref = rest[-1]
        params = rest[:-1]
        f32 = jnp.float32

        h = xt_ref[...]          # no pre-cast: MXU takes f32/bf16 operands natively
        for i in range(num_layers):
            w = params[2 * i][...]
            b = params[2 * i + 1][...]
            h = jnp.dot(w, h, preferred_element_type=f32) + b.astype(f32)
            if i != num_layers - 1:
                h = act(h)
        out_ref[...] = h.astype(out_ref.dtype)

    return kernel


@functools.partial(
    jax.jit, static_argnames=("nonlinearity", "batch_tile", "feature_major"))
def template_motion_forward(x, t, weights, biases, *, nonlinearity="relu",
                            batch_tile=4096, feature_major=False):
    """Forward pass of TemplateMotionGeneration.

    x: [B, passthrough_dim], t: [B, input_dim]
    weights[i]: torch-native [out_i, in_i];  biases[i]: [out_i]
    Returns [B, layer_widths[-1]] (module contract), or the feature-major
    [layer_widths[-1], B] result when feature_major=True (skips the transpose).
    """
    assert x.ndim == 2, "batch of x coords should be two dimensional"
    assert t.ndim == 2, "batch of t vals should be two dimensional"
    assert x.shape[0] == t.shape[0], "inputs should have same batchsize"
    assert len(weights) == len(biases), "one bias per linear layer"
    pd, in_dim = x.shape[1], t.shape[1]
    assert weights[0].shape[1] == pd + in_dim, (
        "layer-0 weight fan-in must equal passthrough_dim + input_dim")

    B = x.shape[0]
    feat_in = pd + in_dim
    out_dim = weights[-1].shape[0]
    dtype = x.dtype
    num_layers = len(weights)

    # Feature-major fused input: hstack((x, t)).T -> [pd+in_dim, B].
    # Tiny sublane stack + transpose; fuses with the rest of this jit.
    xt_fm = jnp.concatenate([x, t], axis=1).T

    params = []
    for w, b in zip(weights, biases):
        assert b.size == w.shape[0]
        params.append(w)
        params.append(b.reshape(w.shape[0], 1))   # [out, 1] -> lane broadcast

    # Batch tiling: one step when B fits (per-step overhead >> compute here);
    # otherwise balanced 128-aligned tiles so multi-TC chips get even work.
    if B <= batch_tile:
        tb = B
    else:
        num_tiles = pl.cdiv(B, batch_tile)
        tb = min(_round_up(pl.cdiv(B, num_tiles), 128), B)
    grid = (pl.cdiv(B, tb),)

    def _resident(shape):
        # Constant index_map -> parameter block is DMA'd once and stays
        # resident in VMEM across all batch tiles.
        return pl.BlockSpec(shape, lambda i: (0, 0))

    in_specs = [pl.BlockSpec((feat_in, tb), lambda i: (0, i))]   # streamed input
    in_specs += [_resident(p.shape) for p in params]             # resident params
    out_specs = pl.BlockSpec((out_dim, tb), lambda i: (0, i))    # lane-dense store

    itemsize = jnp.dtype(dtype).itemsize
    param_bytes = sum(int(p.size) * jnp.dtype(p.dtype).itemsize for p in params)
    bytes_accessed = int(B * (feat_in + out_dim) * itemsize + param_bytes)
    flops = int(2 * B * sum(int(w.shape[0]) * int(w.shape[1]) for w in weights))
    transcend = 0 if nonlinearity == "relu" else int(
        B * sum(int(w.shape[0]) for w in weights[:-1]))

    out_fm = pl.pallas_call(
        _make_mlp_kernel(nonlinearity, num_layers),
        out_shape=jax.ShapeDtypeStruct((out_dim, B), dtype),
        grid=grid,
        in_specs=in_specs,
        out_specs=out_specs,
        compiler_params=pltpu.CompilerParams(
            dimension_semantics=("parallel",)),   # shard batch tiles across TCs
        cost_estimate=pl.CostEstimate(
            flops=flops, transcendentals=transcend, bytes_accessed=bytes_accessed),
    )(xt_fm, *params)

    if feature_major:
        return out_fm
    # Transpose back to the module's [B, out_dim] contract; it lives inside
    # this jit so XLA fuses it with the surrounding program.
    return out_fm.T


def init_params(key, layer_widths, in_dim, dtype=jnp.float32):
    """torch.nn.Linear default init (U(-k, k), k = 1/sqrt(fan_in)).

    Weights kept torch-native [out_features, in_features]; biases [out_features].
    """
    weights, biases = [], []
    prev = in_dim
    for w_out in layer_widths:
        key, kw, kb = jax.random.split(key, 3)
        bound = 1.0 / math.sqrt(prev)
        weights.append(jax.random.uniform(kw, (w_out, prev), dtype, -bound, bound))
        biases.append(jax.random.uniform(kb, (w_out,), dtype, -bound, bound))
        prev = w_out
    return weights, biases


def reference_forward(x, t, weights, biases, nonlinearity="relu"):
    act = _ACTIVATIONS[nonlinearity]
    h = jnp.concatenate([x, t], axis=1)
    n = len(weights)
    for i, (w, b) in enumerate(zip(weights, biases)):
        h = h @ w.T + b
        if i != n - 1:
            h = act(h)
    return h


if __name__ == "__main__":
    # Module config: input_dim (t) = 1, passthrough_dim (x) = 3,
    # layer_widths = [32, 32, 2], float32, default ReLU nonlinearity.
    # TODO(synk): custom_initialization / mean_square_layer_weights are training
    # helpers, not part of forward, and are intentionally not ported.
    input_dim = 1
    passthrough_dim = 3
    layer_widths = [32, 32, 2]

    key = jax.random.PRNGKey(0)
    kx, kt, kp = jax.random.split(key, 3)
    weights, biases = init_params(kp, layer_widths, passthrough_dim + input_dim)

    cases = [
        dict(batch=8, batch_tile=4096),     # tiny single-tile case
        dict(batch=1152, batch_tile=4096),  # realistic batch, single grid step
        dict(batch=1152, batch_tile=512),   # forces balanced 3 x 384 grid tiles
    ]
    for case in cases:
        batch, bt = case["batch"], case["batch_tile"]
        kxb = jax.random.fold_in(kx, batch)
        ktb = jax.random.fold_in(kt, batch)
        x = jax.random.normal(kxb, (batch, passthrough_dim), jnp.float32)
        t = jax.random.uniform(ktb, (batch, input_dim), jnp.float32)

        out = jax.block_until_ready(
            template_motion_forward(x, t, weights, biases, batch_tile=bt))
        ref = reference_forward(x, t, weights, biases)
        assert out.shape == (batch, layer_widths[-1])
        assert jnp.allclose(out, ref, atol=1e-5, rtol=1e-5), (
            case, float(jnp.max(jnp.abs(out - ref))))

        # Feature-major fast path (no output transpose in the hot path).
        out_fm = jax.block_until_ready(
            template_motion_forward(x, t, weights, biases, batch_tile=bt,
                                    feature_major=True))
        assert out_fm.shape == (layer_widths[-1], batch)
        assert jnp.allclose(out_fm.T, ref, atol=1e-5, rtol=1e-5), (
            case, float(jnp.max(jnp.abs(out_fm.T - ref))))

    print("KERNEL_OK")
</pallas_src>

<mosaic_0001>
module attributes {stable_mosaic.version = 11 : i64} {
  func.func @kernel(%arg0: i32, %arg1: memref<4x8xf32, #tpu.memory_space<vmem>>, %arg2: memref<32x4xf32, #tpu.memory_space<vmem>>, %arg3: memref<32x1xf32, #tpu.memory_space<vmem>>, %arg4: memref<32x32xf32, #tpu.memory_space<vmem>>, %arg5: memref<32x1xf32, #tpu.memory_space<vmem>>, %arg6: memref<2x32xf32, #tpu.memory_space<vmem>>, %arg7: memref<2x1xf32, #tpu.memory_space<vmem>>, %arg8: memref<2x8xf32, #tpu.memory_space<vmem>>) attributes {dimension_semantics = [#tpu.dimension_semantics<parallel>], iteration_bounds = array<i64: 1>, scalar_prefetch = 0 : i64, scratch_operands = 0 : i64, tpu.core_type = #tpu.core_type<tc>, window_params = [{transform_indices = @transform_0, window_bounds = array<i64: 4, 8>}, {pipeline_mode = #tpu.pipeline_mode<synchronous>, transform_indices = @transform_1, window_bounds = array<i64: 32, 4>}, {pipeline_mode = #tpu.pipeline_mode<synchronous>, transform_indices = @transform_2, window_bounds = array<i64: 32, 1>}, {pipeline_mode = #tpu.pipeline_mode<synchronous>, transform_indices = @transform_3, window_bounds = array<i64: 32, 32>}, {pipeline_mode = #tpu.pipeline_mode<synchronous>, transform_indices = @transform_4, window_bounds = array<i64: 32, 1>}, {pipeline_mode = #tpu.pipeline_mode<synchronous>, transform_indices = @transform_5, window_bounds = array<i64: 2, 32>}, {pipeline_mode = #tpu.pipeline_mode<synchronous>, transform_indices = @transform_6, window_bounds = array<i64: 2, 1>}, {transform_indices = @transform_7, window_bounds = array<i64: 2, 8>}]} {
    %c0 = arith.constant 0 : index
    %c0_0 = arith.constant 0 : index
    %0 = vector.load %arg1[%c0, %c0_0] : memref<4x8xf32, #tpu.memory_space<vmem>>, vector<4x8xf32>
    %c0_1 = arith.constant 0 : index
    %c0_2 = arith.constant 0 : index
    %1 = vector.load %arg2[%c0_1, %c0_2] : memref<32x4xf32, #tpu.memory_space<vmem>>, vector<32x4xf32>
    %c0_3 = arith.constant 0 : index
    %c0_4 = arith.constant 0 : index
    %2 = vector.load %arg3[%c0_3, %c0_4] : memref<32x1xf32, #tpu.memory_space<vmem>>, vector<32x1xf32>
    %cst = arith.constant dense<0.000000e+00> : vector<32x8xf32>
    %3 = tpu.matmul %1, %0, %cst {dimension_numbers = #tpu.dot_dimension_numbers<[1], [0], [0], [1], [0, 0, 1, 1], [], []>} : vector<32x4xf32>, vector<4x8xf32>, vector<32x8xf32> -> vector<32x8xf32>
    %4 = vector.broadcast %2 : vector<32x1xf32> to vector<32x8xf32>
    %5 = arith.addf %3, %4 : vector<32x8xf32>
    %cst_5 = arith.constant 0.000000e+00 : f32
    %6 = vector.broadcast %cst_5 : f32 to vector<32x8xf32>
    %7 = arith.maximumf %5, %6 : vector<32x8xf32>
    %c0_6 = arith.constant 0 : index
    %c0_7 = arith.constant 0 : index
    %8 = vector.load %arg4[%c0_6, %c0_7] : memref<32x32xf32, #tpu.memory_space<vmem>>, vector<32x32xf32>
    %c0_8 = arith.constant 0 : index
    %c0_9 = arith.constant 0 : index
    %9 = vector.load %arg5[%c0_8, %c0_9] : memref<32x1xf32, #tpu.memory_space<vmem>>, vector<32x1xf32>
    %cst_10 = arith.constant dense<0.000000e+00> : vector<32x8xf32>
    %10 = tpu.matmul %8, %7, %cst_10 {dimension_numbers = #tpu.dot_dimension_numbers<[1], [0], [0], [1], [0, 0, 1, 1], [], []>} : vector<32x32xf32>, vector<32x8xf32>, vector<32x8xf32> -> vector<32x8xf32>
    %11 = vector.broadcast %9 : vector<32x1xf32> to vector<32x8xf32>
    %12 = arith.addf %10, %11 : vector<32x8xf32>
    %cst_11 = arith.constant 0.000000e+00 : f32
    %13 = vector.broadcast %cst_11 : f32 to vector<32x8xf32>
    %14 = arith.maximumf %12, %13 : vector<32x8xf32>
    %c0_12 = arith.constant 0 : index
    %c0_13 = arith.constant 0 : index
    %15 = vector.load %arg6[%c0_12, %c0_13] : memref<2x32xf32, #tpu.memory_space<vmem>>, vector<2x32xf32>
    %c0_14 = arith.constant 0 : index
    %c0_15 = arith.constant 0 : index
    %16 = vector.load %arg7[%c0_14, %c0_15] : memref<2x1xf32, #tpu.memory_space<vmem>>, vector<2x1xf32>
    %cst_16 = arith.constant dense<0.000000e+00> : vector<2x8xf32>
    %17 = tpu.matmul %15, %14, %cst_16 {dimension_numbers = #tpu.dot_dimension_numbers<[1], [0], [0], [1], [0, 0, 1, 1], [], []>} : vector<2x32xf32>, vector<32x8xf32>, vector<2x8xf32> -> vector<2x8xf32>
    %18 = vector.broadcast %16 : vector<2x1xf32> to vector<2x8xf32>
    %19 = arith.addf %17, %18 : vector<2x8xf32>
    %c0_17 = arith.constant 0 : index
    %c0_18 = arith.constant 0 : index
    %20 = vector.load %arg8[%c0_17, %c0_18] : memref<2x8xf32, #tpu.memory_space<vmem>>, vector<2x8xf32>
    tpu.vector_store %arg8[%c0_17, %c0_18], %19 {strides = array<i32>} : memref<2x8xf32, #tpu.memory_space<vmem>>, vector<2x8xf32>,
    return
  }
  func.func @transform_0(%arg0: i32) -> (i32, i32) {
    %c0_i32 = arith.constant 0 : i32
    %c0_i32_0 = arith.constant 0 : i32
    return %c0_i32, %arg0 : i32, i32
  }
  func.func @transform_1(%arg0: i32) -> (i32, i32) {
    %c0_i32 = arith.constant 0 : i32
    %c0_i32_0 = arith.constant 0 : i32
    %c0_i32_1 = arith.constant 0 : i32
    return %c0_i32, %c0_i32_0 : i32, i32
  }
  func.func @transform_2(%arg0: i32) -> (i32, i32) {
    %c0_i32 = arith.constant 0 : i32
    %c0_i32_0 = arith.constant 0 : i32
    %c0_i32_1 = arith.constant 0 : i32
    return %c0_i32, %c0_i32_0 : i32, i32
  }
  func.func @transform_3(%arg0: i32) -> (i32, i32) {
    %c0_i32 = arith.constant 0 : i32
    %c0_i32_0 = arith.constant 0 : i32
    %c0_i32_1 = arith.constant 0 : i32
    return %c0_i32, %c0_i32_0 : i32, i32
  }
  func.func @transform_4(%arg0: i32) -> (i32, i32) {
    %c0_i32 = arith.constant 0 : i32
    %c0_i32_0 = arith.constant 0 : i32
    %c0_i32_1 = arith.constant 0 : i32
    return %c0_i32, %c0_i32_0 : i32, i32
  }
  func.func @transform_5(%arg0: i32) -> (i32, i32) {
    %c0_i32 = arith.constant 0 : i32
    %c0_i32_0 = arith.constant 0 : i32
    %c0_i32_1 = arith.constant 0 : i32
    return %c0_i32, %c0_i32_0 : i32, i32
  }
  func.func @transform_6(%arg0: i32) -> (i32, i32) {
    %c0_i32 = arith.constant 0 : i32
    %c0_i32_0 = arith.constant 0 : i32
    %c0_i32_1 = arith.constant 0 : i32
    return %c0_i32, %c0_i32_0 : i32, i32
  }
  func.func @transform_7(%arg0: i32) -> (i32, i32) {
    %c0_i32 = arith.constant 0 : i32
    %c0_i32_0 = arith.constant 0 : i32
    return %c0_i32, %arg0 : i32, i32
  }
}

</mosaic_0001>

<llo_original>
// kernel: template_motion_forward.1
$region0: #{template_motion_forward.1}
  #allocation0 [shape = 'u32[]', space=smem, size = 0x4, offset = 0x4, fixed_abs, tag = 'smem constant byte address 0x4 - core index']
  #allocation1 [shape = 'u32[144,128]{1,0:T(1,128)}', space=vmem, size = 0x12000, scoped, tag = 'internal scratch']
  %s0 = inlined_call_operand.vmem [shape: f32[4,8], index: 0, kind: input, shape index: {}]
  %s1 = inlined_call_operand.vmem [shape: f32[32,4], index: 1, kind: input, shape index: {}]
  %s2 = inlined_call_operand.vmem [shape: f32[32,1], index: 2, kind: input, shape index: {}]
  %s3 = inlined_call_operand.vmem [shape: f32[32,32], index: 3, kind: input, shape index: {}]
  %s4 = inlined_call_operand.vmem [shape: f32[32,1], index: 4, kind: input, shape index: {}]
  %s5 = inlined_call_operand.vmem [shape: f32[2,32], index: 5, kind: input, shape index: {}]
  %s6 = inlined_call_operand.vmem [shape: f32[2,1], index: 6, kind: input, shape index: {}]
  %s7 = inlined_call_operand.hbm [shape: f32[2,8], index: 7, kind: output, shape index: {}]
  %s8 = sld [smem:[#allocation0]]
  $region38: #{template_motion_forward.1} parent=0
    _
  %s10 = ssub.s32 1, %s8
  %s11 = scalar_select 0, %s10, %s8
  $region1: #{template_motion_forward.1} parent=0
    #allocation2 [shape = 'u8[1024]{0}', space=vmem, size = 0x400, scoped, tag = 'output window, operand 0, single buffered']
    #allocation3 [shape = 's32[1]{0}', space=sflag, size = 0x4, scoped, tag = 'scoped memory for template_motion_forward.1']
    %12 = vsyncpa [#allocation3], 0
    // Predicated region
    $region2: #{template_motion_forward.1} parent=1 // pred_check
      _
    $region3: #{template_motion_forward.1} parent=1 // pred_check_branch
      %14 = sbr.rel (0) target = $region5
    $region4: #{template_motion_forward.1} parent=1 // pred_region
      _
    $region5: #{template_motion_forward.1} parent=1 // pred_fallthru
      _
    // Predicated region
    $region6: #{template_motion_forward.1} parent=1 // pred_check
      _
    $region7: #{template_motion_forward.1} parent=1 // pred_check_branch
      %16 = sbr.rel (0) target = $region9
    $region8: #{template_motion_forward.1} parent=1 // pred_region
      _
    $region9: #{template_motion_forward.1} parent=1 // pred_fallthru
      _
    // Predicated region
    $region10: #{template_motion_forward.1} parent=1 // pred_check
      _
    $region11: #{template_motion_forward.1} parent=1 // pred_check_branch
      %18 = sbr.rel (0) target = $region13
    $region12: #{template_motion_forward.1} parent=1 // pred_region
      _
    $region13: #{template_motion_forward.1} parent=1 // pred_fallthru
      _
    // Predicated region
    $region14: #{template_motion_forward.1} parent=1 // pred_check
      _
    $region15: #{template_motion_forward.1} parent=1 // pred_check_branch
      %20 = sbr.rel (0) target = $region17
    $region16: #{template_motion_forward.1} parent=1 // pred_region
      _
    $region17: #{template_motion_forward.1} parent=1 // pred_fallthru
      _
    // Predicated region
    $region18: #{template_motion_forward.1} parent=1 // pred_check
      _
    $region19: #{template_motion_forward.1} parent=1 // pred_check_branch
      %22 = sbr.rel (0) target = $region21
    $region20: #{template_motion_forward.1} parent=1 // pred_region
      _
    $region21: #{template_motion_forward.1} parent=1 // pred_fallthru
      _
    // Predicated region
    $region22: #{template_motion_forward.1} parent=1 // pred_check
      _
    $region23: #{template_motion_forward.1} parent=1 // pred_check_branch
      %24 = sbr.rel (0) target = $region25
    $region24: #{template_motion_forward.1} parent=1 // pred_region
      _
    $region25: #{template_motion_forward.1} parent=1 // pred_fallthru
      _
    // Predicated region
    $region26: #{template_motion_forward.1} parent=1 // pred_check
      _
    $region27: #{template_motion_forward.1} parent=1 // pred_check_branch
      %26 = sbr.rel (0) target = $region29
    $region28: #{template_motion_forward.1} parent=1 // pred_region
      _
    $region29: #{template_motion_forward.1} parent=1 // pred_fallthru
      _
    %v27 = vld [vmem:[%s0] sm:$0xf]
    %v28 = vld [vmem:[%s1] sm:$0xff]
    %v29 = vld [vmem:[%s1 + $0x8] sm:$0xff]
    %v30 = vld [vmem:[%s1 + $0x10] sm:$0xff]
    %v31 = vld [vmem:[%s1 + $0x18] sm:$0xff]
    %v32 = vld [vmem:[%s2] sm:$0xff]
    %v33 = vld [vmem:[%s2 + $0x8] sm:$0xff]
    %v34 = vld [vmem:[%s2 + $0x10] sm:$0xff]
    %v35 = vld [vmem:[%s2 + $0x18] sm:$0xff]
    %37 = vset.pattern.permute.xlu0 0
    %38 = vperm.xlu0 %37, %v32
    %v39 = vpop.permute.xlu0 %38
    %42 = vset.pattern.permute.xlu0 0
    %43 = vperm.xlu0 %42, %v33
    %v44 = vpop.permute.xlu0 %43
    %47 = vset.pattern.permute.xlu0 0
    %48 = vperm.xlu0 %47, %v34
    %v49 = vpop.permute.xlu0 %48
    %52 = vset.pattern.permute.xlu0 0
    %53 = vperm.xlu0 %52, %v35
    %v54 = vpop.permute.xlu0 %53
    %vm56 = vcmask 31744
    %v58 = vsel %vm56, %v28, 0
    %v61 = vsel %vm56, %v29, 0
    %v64 = vsel %vm56, %v30, 0
    %v67 = vsel %vm56, %v31, 0
    %vm69 = vcmask 1043456
    %v71 = vsel %vm69, %v27, 0
    %73 = vmatprep.subr.mxu0 0.0
    %74 = vmatpush1.msra.mxu0 %v71
    %75 = vmatprep.subr.mxu0 0.0
    %76 = vmatpush1.msra.mxu0 0.0
    %77 = vmatprep.subr.mxu0 0.0
    %78 = vmatpush1.msra.mxu0 0.0
    %79 = vmatprep.subr.mxu0 0.0
    %80 = vmatpush1.msra.mxu0 0.0
    %81 = vmatprep.subr.mxu0 0.0
    %82 = vmatpush1.msra.mxu0 0.0
    %83 = vmatprep.subr.mxu0 0.0
    %84 = vmatpush1.msra.mxu0 0.0
    %85 = vmatprep.subr.mxu0 0.0
    %86 = vmatpush1.msra.mxu0 0.0
    %87 = vmatprep.subr.mxu0 0.0
    %88 = vmatpush1.msra.mxu0 0.0
    %89 = vmatprep.subr.mxu0 0.0
    %90 = vmatpush1.msra.mxu0 0.0
    %91 = vmatprep.subr.mxu0 0.0
    %92 = vmatpush1.msra.mxu0 0.0
    %93 = vmatprep.subr.mxu0 0.0
    %94 = vmatpush1.msra.mxu0 0.0
    %95 = vmatprep.subr.mxu0 0.0
    %96 = vmatpush1.msra.mxu0 0.0
    %97 = vmatprep.subr.mxu0 0.0
    %98 = vmatpush1.msra.mxu0 0.0
    %99 = vmatprep.subr.mxu0 0.0
    %100 = vmatpush1.msra.mxu0 0.0
    %101 = vmatprep.subr.mxu0 0.0
    %102 = vmatpush1.msra.mxu0 0.0
    %103 = vmatprep.subr.mxu0 0.0
    %104 = vmatpush1.msra.mxu0 0.0
    %105 = vmatprep.subr.mxu0 0.0
    %106 = vmatpush1.msra.mxu0 0.0
    %107 = vmatprep.subr.mxu0 0.0
    %108 = vmatpush1.msra.mxu0 0.0
    %109 = vmatprep.subr.mxu0 0.0
    %110 = vmatpush1.msra.mxu0 0.0
    %111 = vmatprep.subr.mxu0 0.0
    %112 = vmatpush1.msra.mxu0 0.0
    %113 = vmatprep.subr.mxu0 0.0
    %114 = vmatpush1.msra.mxu0 0.0
    %115 = vmatprep.subr.mxu0 0.0
    %116 = vmatpush1.msra.mxu0 0.0
    %117 = vmatprep.subr.mxu0 0.0
    %118 = vmatpush1.msra.mxu0 0.0
    %119 = vmatprep.subr.mxu0 0.0
    %120 = vmatpush1.msra.mxu0 0.0
    %121 = vmatprep.subr.mxu0 0.0
    %122 = vmatpush1.msra.mxu0 0.0
    %123 = vmatprep.subr.mxu0 0.0
    %124 = vmatpush1.msra.mxu0 0.0
    %125 = vmatprep.subr.mxu0 0.0
    %126 = vmatpush1.msra.mxu0 0.0
    %127 = vmatprep.subr.mxu0 0.0
    %128 = vmatpush1.msra.mxu0 0.0
    %129 = vmatprep.subr.mxu0 0.0
    %130 = vmatpush1.msra.mxu0 0.0
    %131 = vmatprep.subr.mxu0 0.0
    %132 = vmatpush1.msra.mxu0 0.0
    %133 = vmatprep.subr.mxu0 0.0
    %134 = vmatpush1.msra.mxu0 0.0
    %135 = vmatprep.subr.mxu0 0.0
    %136 = vmatpush1.msra.mxu0 0.0
    %137 = vmatprep.mubr.f32.mxu0 0.0
    %138 = vmatmul.mubr.f32.gmra.mrb[0].mxu0 %v58
    %v139 = vpop.f32.mrb[0].mxu0
    %v140 = vadd.f32 %v39, %v139
    %v141 = vpop.f32.mrb[0].mxu0
    %142 = vmatprep.mubr.f32.mxu0 0.0
    %143 = vmatmul.mubr.f32.gmra.mrb[0].mxu0 %v61
    %v144 = vpop.f32.mrb[0].mxu0
    %v145 = vadd.f32 %v44, %v144
    %v146 = vpop.f32.mrb[0].mxu0
    %147 = vmatprep.mubr.f32.mxu0 0.0
    %148 = vmatmul.mubr.f32.gmra.mrb[0].mxu0 %v64
    %v149 = vpop.f32.mrb[0].mxu0
    %v150 = vadd.f32 %v49, %v149
    %v151 = vpop.f32.mrb[0].mxu0
    %152 = vmatprep.mubr.f32.mxu0 0.0
    %153 = vmatmul.mubr.f32.gmra.mrb[0].mxu0 %v67
    %v154 = vpop.f32.mrb[0].mxu0
    %v155 = vadd.f32 %v54, %v154
    %v156 = vpop.f32.mrb[0].mxu0
    %157 = vdwg.mxu0
    %v158 = vmax.f32 %v140, 0.0
    %v159 = vmax.f32 %v145, 0.0
    %v160 = vmax.f32 %v150, 0.0
    %v161 = vmax.f32 %v155, 0.0
    %v162 = vld [vmem:[%s3] sm:$0xff]
    %v163 = vld [vmem:[%s3 + $0x8] sm:$0xff]
    %v164 = vld [vmem:[%s3 + $0x10] sm:$0xff]
    %v165 = vld [vmem:[%s3 + $0x18] sm:$0xff]
    %v166 = vld [vmem:[%s4] sm:$0xff]
    %v167 = vld [vmem:[%s4 + $0x8] sm:$0xff]
    %v168 = vld [vmem:[%s4 + $0x10] sm:$0xff]
    %v169 = vld [vmem:[%s4 + $0x18] sm:$0xff]
    %171 = vset.pattern.permute.xlu0 0
    %172 = vperm.xlu0 %171, %v166
    %v173 = vpop.permute.xlu0 %172
    %176 = vset.pattern.permute.xlu0 0
    %177 = vperm.xlu0 %176, %v167
    %v178 = vpop.permute.xlu0 %177
    %181 = vset.pattern.permute.xlu0 0
    %182 = vperm.xlu0 %181, %v168
    %v183 = vpop.permute.xlu0 %182
    %186 = vset.pattern.permute.xlu0 0
    %187 = vperm.xlu0 %186, %v169
    %v188 = vpop.permute.xlu0 %187
    %vm190 = vcmask 261120
    %v192 = vsel %vm190, %v162, 0
    %v195 = vsel %vm190, %v163, 0
    %v198 = vsel %vm190, %v164, 0
    %v201 = vsel %vm190, %v165, 0
    %203 = vmatprep.subr.mxu0 0.0
    %204 = vmatpush1.msra.mxu0 %v158
    %205 = vmatprep.subr.mxu0 0.0
    %206 = vmatpush1.msra.mxu0 %v159
    %207 = vmatprep.subr.mxu0 0.0
    %208 = vmatpush1.msra.mxu0 %v160
    %209 = vmatprep.subr.mxu0 0.0
    %210 = vmatpush1.msra.mxu0 %v161
    %211 = vmatprep.subr.mxu0 0.0
    %212 = vmatpush1.msra.mxu0 0.0
    %213 = vmatprep.subr.mxu0 0.0
    %214 = vmatpush1.msra.mxu0 0.0
    %215 = vmatprep.subr.mxu0 0.0
    %216 = vmatpush1.msra.mxu0 0.0
    %217 = vmatprep.subr.mxu0 0.0
    %218 = vmatpush1.msra.mxu0 0.0
    %219 = vmatprep.subr.mxu0 0.0
    %220 = vmatpush1.msra.mxu0 0.0
    %221 = vmatprep.subr.mxu0 0.0
    %222 = vmatpush1.msra.mxu0 0.0
    %223 = vmatprep.subr.mxu0 0.0
    %224 = vmatpush1.msra.mxu0 0.0
    %225 = vmatprep.subr.mxu0 0.0
    %226 = vmatpush1.msra.mxu0 0.0
    %227 = vmatprep.subr.mxu0 0.0
    %228 = vmatpush1.msra.mxu0 0.0
    %229 = vmatprep.subr.mxu0 0.0
    %230 = vmatpush1.msra.mxu0 0.0
    %231 = vmatprep.subr.mxu0 0.0
    %232 = vmatpush1.msra.mxu0 0.0
    %233 = vmatprep.subr.mxu0 0.0
    %234 = vmatpush1.msra.mxu0 0.0
    %235 = vmatprep.subr.mxu0 0.0
    %236 = vmatpush1.msra.mxu0 0.0
    %237 = vmatprep.subr.mxu0 0.0
    %238 = vmatpush1.msra.mxu0 0.0
    %239 = vmatprep.subr.mxu0 0.0
    %240 = vmatpush1.msra.mxu0 0.0
    %241 = vmatprep.subr.mxu0 0.0
    %242 = vmatpush1.msra.mxu0 0.0
    %243 = vmatprep.subr.mxu0 0.0
    %244 = vmatpush1.msra.mxu0 0.0
    %245 = vmatprep.subr.mxu0 0.0
    %246 = vmatpush1.msra.mxu0 0.0
    %247 = vmatprep.subr.mxu0 0.0
    %248 = vmatpush1.msra.mxu0 0.0
    %249 = vmatprep.subr.mxu0 0.0
    %250 = vmatpush1.msra.mxu0 0.0
    %251 = vmatprep.subr.mxu0 0.0
    %252 = vmatpush1.msra.mxu0 0.0
    %253 = vmatprep.subr.mxu0 0.0
    %254 = vmatpush1.msra.mxu0 0.0
    %255 = vmatprep.subr.mxu0 0.0
    %256 = vmatpush1.msra.mxu0 0.0
    %257 = vmatprep.subr.mxu0 0.0
    %258 = vmatpush1.msra.mxu0 0.0
    %259 = vmatprep.subr.mxu0 0.0
    %260 = vmatpush1.msra.mxu0 0.0
    %261 = vmatprep.subr.mxu0 0.0
    %262 = vmatpush1.msra.mxu0 0.0
    %263 = vmatprep.subr.mxu0 0.0
    %264 = vmatpush1.msra.mxu0 0.0
    %265 = vmatprep.subr.mxu0 0.0
    %266 = vmatpush1.msra.mxu0 0.0
    %267 = vmatprep.mubr.f32.mxu0 0.0
    %268 = vmatmul.mubr.f32.gmra.mrb[0].mxu0 %v192
    %v269 = vpop.f32.mrb[0].mxu0
    %v270 = vadd.f32 %v173, %v269
    %v271 = vpop.f32.mrb[0].mxu0
    %272 = vmatprep.mubr.f32.mxu0 0.0
    %273 = vmatmul.mubr.f32.gmra.mrb[0].mxu0 %v195
    %v274 = vpop.f32.mrb[0].mxu0
    %v275 = vadd.f32 %v178, %v274
    %v276 = vpop.f32.mrb[0].mxu0
    %277 = vmatprep.mubr.f32.mxu0 0.0
    %278 = vmatmul.mubr.f32.gmra.mrb[0].mxu0 %v198
    %v279 = vpop.f32.mrb[0].mxu0
    %v280 = vadd.f32 %v183, %v279
    %v281 = vpop.f32.mrb[0].mxu0
    %282 = vmatprep.mubr.f32.mxu0 0.0
    %283 = vmatmul.mubr.f32.gmra.mrb[0].mxu0 %v201
    %v284 = vpop.f32.mrb[0].mxu0
    %v285 = vadd.f32 %v188, %v284
    %v286 = vpop.f32.mrb[0].mxu0
    %287 = vdwg.mxu0
    %v288 = vmax.f32 %v270, 0.0
    %v289 = vmax.f32 %v275, 0.0
    %v290 = vmax.f32 %v280, 0.0
    %v291 = vmax.f32 %v285, 0.0
    %v292 = vld [vmem:[%s5] sm:$0x3]
    %v293 = vld [vmem:[%s6] sm:$0x3]
    %295 = vset.pattern.permute.xlu0 0
    %296 = vperm.xlu0 %295, %v293
    %v297 = vpop.permute.xlu0 %296
    %v300 = vsel %vm190, %v292, 0
    %302 = vmatprep.subr.mxu0 0.0
    %303 = vmatpush1.msra.mxu0 %v288
    %304 = vmatprep.subr.mxu0 0.0
    %305 = vmatpush1.msra.mxu0 %v289
    %306 = vmatprep.subr.mxu0 0.0
    %307 = vmatpush1.msra.mxu0 %v290
    %308 = vmatprep.subr.mxu0 0.0
    %309 = vmatpush1.msra.mxu0 %v291
    %310 = vmatprep.subr.mxu0 0.0
    %311 = vmatpush1.msra.mxu0 0.0
    %312 = vmatprep.subr.mxu0 0.0
    %313 = vmatpush1.msra.mxu0 0.0
    %314 = vmatprep.subr.mxu0 0.0
    %315 = vmatpush1.msra.mxu0 0.0
    %316 = vmatprep.subr.mxu0 0.0
    %317 = vmatpush1.msra.mxu0 0.0
    %318 = vmatprep.subr.mxu0 0.0
    %319 = vmatpush1.msra.mxu0 0.0
    %320 = vmatprep.subr.mxu0 0.0
    %321 = vmatpush1.msra.mxu0 0.0
    %322 = vmatprep.subr.mxu0 0.0
    %323 = vmatpush1.msra.mxu0 0.0
    %324 = vmatprep.subr.mxu0 0.0
    %325 = vmatpush1.msra.mxu0 0.0
    %326 = vmatprep.subr.mxu0 0.0
    %327 = vmatpush1.msra.mxu0 0.0
    %328 = vmatprep.subr.mxu0 0.0
    %329 = vmatpush1.msra.mxu0 0.0
    %330 = vmatprep.subr.mxu0 0.0
    %331 = vmatpush1.msra.mxu0 0.0
    %332 = vmatprep.subr.mxu0 0.0
    %333 = vmatpush1.msra.mxu0 0.0
    %334 = vmatprep.subr.mxu0 0.0
    %335 = vmatpush1.msra.mxu0 0.0
    %336 = vmatprep.subr.mxu0 0.0
    %337 = vmatpush1.msra.mxu0 0.0
    %338 = vmatprep.subr.mxu0 0.0
    %339 = vmatpush1.msra.mxu0 0.0
    %340 = vmatprep.subr.mxu0 0.0
    %341 = vmatpush1.msra.mxu0 0.0
    %342 = vmatprep.subr.mxu0 0.0
    %343 = vmatpush1.msra.mxu0 0.0
    %344 = vmatprep.subr.mxu0 0.0
    %345 = vmatpush1.msra.mxu0 0.0
    %346 = vmatprep.subr.mxu0 0.0
    %347 = vmatpush1.msra.mxu0 0.0
    %348 = vmatprep.subr.mxu0 0.0
    %349 = vmatpush1.msra.mxu0 0.0
    %350 = vmatprep.subr.mxu0 0.0
    %351 = vmatpush1.msra.mxu0 0.0
    %352 = vmatprep.subr.mxu0 0.0
    %353 = vmatpush1.msra.mxu0 0.0
    %354 = vmatprep.subr.mxu0 0.0
    %355 = vmatpush1.msra.mxu0 0.0
    %356 = vmatprep.subr.mxu0 0.0
    %357 = vmatpush1.msra.mxu0 0.0
    %358 = vmatprep.subr.mxu0 0.0
    %359 = vmatpush1.msra.mxu0 0.0
    %360 = vmatprep.subr.mxu0 0.0
    %361 = vmatpush1.msra.mxu0 0.0
    %362 = vmatprep.subr.mxu0 0.0
    %363 = vmatpush1.msra.mxu0 0.0
    %364 = vmatprep.subr.mxu0 0.0
    %365 = vmatpush1.msra.mxu0 0.0
    %366 = vmatprep.mubr.f32.mxu0 0.0
    %367 = vmatmul.mubr.f32.gmra.mrb[0].mxu0 %v300
    %v368 = vpop.f32.mrb[0].mxu0
    %v369 = vadd.f32 %v297, %v368
    %v370 = vpop.f32.mrb[0].mxu0
    %371 = vdwg.mxu0
    %vm372 = vcmask 58368
    %373 = vst.msk [vmem:[#allocation2] sm:$0x3] %vm372, %v369
    // Predicated region
    $region30: #{template_motion_forward.1} parent=1 // pred_check
      _
    $region31: #{template_motion_forward.1} parent=1 // pred_check_branch
      %375 = sbr.rel (0) target = $region33
    $region32: #{template_motion_forward.1} parent=1 // pred_region
      %s377 = ssub.s32 32, 32
      %378 = vsyncadd [#allocation3], %s377
      %s380 = sshll.u32 [#allocation2], 4
      %s381 = int_to_ptr.vmem [resolvable:$true] %s380
      %383 = dma.vmem_to_hbm [thread:$0]  %s381, 32, %s7, [#allocation3]
    $region33: #{template_motion_forward.1} parent=1 // pred_fallthru
      _
    // Predicated region
    $region34: #{template_motion_forward.1} parent=1 // pred_check
      _
    $region35: #{template_motion_forward.1} parent=1 // pred_check_branch
      %385 = sbr.rel (0) target = $region37
    $region36: #{template_motion_forward.1} parent=1 // pred_region
      %386 = dma.done [#allocation3], 32
    $region37: #{template_motion_forward.1} parent=1 // pred_fallthru
      _
    %387 = vsyncpa [#allocation3], 1

</llo_original>
